<compile_context>
chip_gen: v7x
topology: tpu7x:2x2x1
jax: 0.10.0
libtpu: 0.0.40
codegen_flags: <defaults>
</compile_context>

<pallas_src>
import functools
import math

import jax
import jax.numpy as jnp
from jax import lax
from jax.experimental import pallas as pl
from jax.experimental.pallas import tpu as pltpu


# ----------------------------------------------------------------------------
# K-tiled matmul kernel (used for the Q/K/V and output projections, no bias).
# ----------------------------------------------------------------------------
def _matmul_kernel(x_ref, w_ref, o_ref, acc_ref):
    @pl.when(pl.program_id(2) == 0)
    def _init():
        acc_ref[...] = jnp.zeros_like(acc_ref)

    acc_ref[...] += jnp.dot(x_ref[...], w_ref[...],
                            preferred_element_type=jnp.float32)

    @pl.when(pl.program_id(2) == pl.num_programs(2) - 1)
    def _finalize():
        o_ref[...] = acc_ref[...].astype(o_ref.dtype)


def _round_up(x, m):
    return ((x + m - 1) // m) * m


def matmul(x, w, *, tm=256, tn=256, tk=512):
    """x: (M, K) f32, w: (K, N) f32 (already transposed) -> (M, N) f32."""
    M, K = x.shape
    Kw, N = w.shape
    assert K == Kw

    # Clamp tiles for small problems; keep (8, 128) alignment via padding.
    tm = min(tm, _round_up(M, 8))
    tn = min(tn, _round_up(N, 128))
    tk = min(tk, _round_up(K, 128))
    Mp, Kp, Np = _round_up(M, tm), _round_up(K, tk), _round_up(N, tn)

    xp = x if (Mp, Kp) == (M, K) else jnp.pad(x, ((0, Mp - M), (0, Kp - K)))
    wp = w if (Kp, Np) == (K, N) else jnp.pad(w, ((0, Kp - K), (0, Np - N)))

    grid = (Mp // tm, Np // tn, Kp // tk)
    out = pl.pallas_call(
        _matmul_kernel,
        out_shape=jax.ShapeDtypeStruct((Mp, Np), jnp.float32),
        grid_spec=pltpu.PrefetchScalarGridSpec(
            num_scalar_prefetch=0,
            grid=grid,
            in_specs=[
                pl.BlockSpec((tm, tk), lambda i, j, kk: (i, kk)),
                pl.BlockSpec((tk, tn), lambda i, j, kk: (kk, j)),
            ],
            out_specs=pl.BlockSpec((tm, tn), lambda i, j, kk: (i, j)),
            scratch_shapes=[pltpu.VMEM((tm, tn), jnp.float32)],
        ),
        compiler_params=pltpu.CompilerParams(
            dimension_semantics=("parallel", "parallel", "arbitrary")),
        cost_estimate=pl.CostEstimate(
            flops=2 * Mp * Np * Kp,
            transcendentals=0,
            bytes_accessed=4 * (Mp * Kp + Kp * Np + Mp * Np)),
    )(xp, wp)

    if (Mp, Np) != (M, N):
        out = out[:M, :N]
    return out


# ----------------------------------------------------------------------------
# Scaled dot-product attention kernel: one (batch, head) pair per grid point.
# ----------------------------------------------------------------------------
def _attention_math(q, k, v, inv_temp, neg_mask=None):
    # scores = (q / temperature) @ k^T   (contraction on the head dim, trans_b)
    s = lax.dot_general(q * inv_temp, k, (((1,), (1,)), ((), ())),
                        preferred_element_type=jnp.float32)
    if neg_mask is not None:
        s = jnp.where(neg_mask, -jnp.inf, s)
    # numerically stable softmax along the key axis
    m = jnp.max(s, axis=-1, keepdims=True)
    p = jnp.exp(s - m)
    attn = p / jnp.sum(p, axis=-1, keepdims=True)
    out = jnp.dot(attn, v, preferred_element_type=jnp.float32)
    return out, attn


def _attn_kernel(q_ref, k_ref, v_ref, o_ref, attn_ref, *, inv_temp):
    q = q_ref[...].reshape(q_ref.shape[2:])    # (Sq, d_k)
    k = k_ref[...].reshape(k_ref.shape[2:])    # (Sk, d_k)
    v = v_ref[...].reshape(v_ref.shape[2:])    # (Sk, d_v)
    out, attn = _attention_math(q, k, v, inv_temp)
    o_ref[...] = out.reshape(o_ref.shape).astype(o_ref.dtype)
    attn_ref[...] = attn.reshape(attn_ref.shape).astype(attn_ref.dtype)


def _attn_kernel_masked(q_ref, k_ref, v_ref, mask_ref, o_ref, attn_ref, *, inv_temp):
    q = q_ref[...].reshape(q_ref.shape[2:])
    k = k_ref[...].reshape(k_ref.shape[2:])
    v = v_ref[...].reshape(v_ref.shape[2:])
    neg_mask = mask_ref[...].reshape(mask_ref.shape[1:]) != 0   # (Sq, Sk) bool
    out, attn = _attention_math(q, k, v, inv_temp, neg_mask)
    o_ref[...] = out.reshape(o_ref.shape).astype(o_ref.dtype)
    attn_ref[...] = attn.reshape(attn_ref.shape).astype(attn_ref.dtype)


def scaled_dot_product_attention(q, k, v, temperature, mask=None):
    """q: (B,H,Sq,d_k), k: (B,H,Sk,d_k), v: (B,H,Sk,d_v); mask: (B,Sq,Sk) or None."""
    B, H, Sq, d_k = q.shape
    Sk = k.shape[2]
    d_v = v.shape[3]
    inv_temp = 1.0 / float(temperature)

    in_specs = [
        pl.BlockSpec((1, 1, Sq, d_k), lambda b, h: (b, h, 0, 0)),
        pl.BlockSpec((1, 1, Sk, d_k), lambda b, h: (b, h, 0, 0)),
        pl.BlockSpec((1, 1, Sk, d_v), lambda b, h: (b, h, 0, 0)),
    ]
    args = [q, k, v]
    if mask is None:
        kernel = functools.partial(_attn_kernel, inv_temp=inv_temp)
    else:
        kernel = functools.partial(_attn_kernel_masked, inv_temp=inv_temp)
        in_specs.append(pl.BlockSpec((1, Sq, Sk), lambda b, h: (b, 0, 0)))
        args.append(mask.astype(jnp.int32))

    out_shapes = (jax.ShapeDtypeStruct((B, H, Sq, d_v), jnp.float32),
                  jax.ShapeDtypeStruct((B, H, Sq, Sk), jnp.float32))
    out_specs = (pl.BlockSpec((1, 1, Sq, d_v), lambda b, h: (b, h, 0, 0)),
                 pl.BlockSpec((1, 1, Sq, Sk), lambda b, h: (b, h, 0, 0)))

    return pl.pallas_call(
        kernel,
        out_shape=out_shapes,
        grid_spec=pltpu.PrefetchScalarGridSpec(
            num_scalar_prefetch=0,
            grid=(B, H),
            in_specs=in_specs,
            out_specs=out_specs,
        ),
        compiler_params=pltpu.CompilerParams(
            dimension_semantics=("parallel", "parallel")),
    )(*args)


# ----------------------------------------------------------------------------
# Full MultiheadAttention forward.  Weights are stored pre-transposed
# (in_features, out_features) so no weight.T is materialized per call.
# ----------------------------------------------------------------------------
def multihead_attention(q, k, v, wq, wk, wv, wo, *, num_heads, mask=None):
    B, Sq, d_model = q.shape
    Sk = k.shape[1]
    H = num_heads
    d_k = wq.shape[1] // H
    d_v = wv.shape[1] // H
    temperature = math.sqrt(H * d_k)

    def proj_split(x, w, d_head):
        S = x.shape[1]
        y = matmul(x.reshape(B * S, d_model), w)               # (B*S, H*d_head)
        return y.reshape(B, S, H, d_head).transpose(0, 2, 1, 3)  # (B, H, S, d_head)

    qh = proj_split(q, wq, d_k)
    kh = proj_split(k, wk, d_k)
    vh = proj_split(v, wv, d_v)

    out_h, attn = scaled_dot_product_attention(qh, kh, vh, temperature, mask=mask)

    out = out_h.transpose(0, 2, 1, 3).reshape(B * Sq, H * d_v)   # merge heads
    out = matmul(out, wo).reshape(B, Sq, d_model)
    return out, attn


# ----------------------------------------------------------------------------
# Pure-JAX reference (mirrors the PyTorch module exactly).
# ----------------------------------------------------------------------------
def ref_multihead_attention(q, k, v, wq, wk, wv, wo, *, num_heads, mask=None):
    B, Sq, d_model = q.shape
    H = num_heads
    d_k = wq.shape[1] // H
    d_v = wv.shape[1] // H
    temp = math.sqrt(H * d_k)

    def split(x, w, d):
        y = x @ w
        return y.reshape(B, x.shape[1], H, d).transpose(0, 2, 1, 3)

    qh, kh, vh = split(q, wq, d_k), split(k, wk, d_k), split(v, wv, d_v)
    s = jnp.einsum("bhqd,bhkd->bhqk", qh / temp, kh)
    if mask is not None:
        s = jnp.where(mask[:, None, :, :] != 0, -jnp.inf, s)
    attn = jax.nn.softmax(s, axis=-1)
    out = jnp.einsum("bhqk,bhkd->bhqd", attn, vh)
    out = out.transpose(0, 2, 1, 3).reshape(B, Sq, H * d_v)
    return out @ wo, attn


if __name__ == "__main__":
    key = jax.random.PRNGKey(0)
    kq, kk_, kv, k1, k2, k3, k4 = jax.random.split(key, 7)

    B, S, d_model, H, d_k, d_v = 2, 8, 32, 2, 16, 16

    q = jax.random.normal(kq, (B, S, d_model), jnp.float32)
    k = jax.random.normal(kk_, (B, S, d_model), jnp.float32)
    v = jax.random.normal(kv, (B, S, d_model), jnp.float32)

    # Projection weights stored as (in_features, out_features), no bias (per module).
    wq = jax.random.normal(k1, (d_model, H * d_k), jnp.float32) / math.sqrt(d_model)
    wk = jax.random.normal(k2, (d_model, H * d_k), jnp.float32) / math.sqrt(d_model)
    wv = jax.random.normal(k3, (d_model, H * d_v), jnp.float32) / math.sqrt(d_model)
    wo = jax.random.normal(k4, (H * d_v, d_model), jnp.float32) / math.sqrt(H * d_v)

    # --- unmasked path ---
    out, attn = multihead_attention(q, k, v, wq, wk, wv, wo, num_heads=H)
    out = jax.block_until_ready(out)
    attn = jax.block_until_ready(attn)

    out_r, attn_r = ref_multihead_attention(q, k, v, wq, wk, wv, wo, num_heads=H)
    assert out.shape == (B, S, d_model)
    assert attn.shape == (B, H, S, S)
    assert jnp.allclose(out, out_r, atol=1e-4, rtol=1e-4)
    assert jnp.allclose(attn, attn_r, atol=1e-5, rtol=1e-5)

    # --- masked path (strict upper-triangular mask = causal) ---
    mask = (jnp.arange(S)[None, :] > jnp.arange(S)[:, None])          # (S, S) bool
    mask = jnp.broadcast_to(mask, (B, S, S))
    out_m, attn_m = multihead_attention(q, k, v, wq, wk, wv, wo, num_heads=H, mask=mask)
    out_m = jax.block_until_ready(out_m)
    attn_m = jax.block_until_ready(attn_m)

    out_mr, attn_mr = ref_multihead_attention(q, k, v, wq, wk, wv, wo,
                                              num_heads=H, mask=mask)
    assert jnp.allclose(out_m, out_mr, atol=1e-4, rtol=1e-4)
    assert jnp.allclose(attn_m, attn_mr, atol=1e-5, rtol=1e-5)

    print("KERNEL_OK")
</pallas_src>

<mosaic_0001>
module attributes {stable_mosaic.version = 11 : i64} {
  func.func @_matmul_kernel(%arg0: i32, %arg1: i32, %arg2: i32, %arg3: memref<16x128xf32, #tpu.memory_space<vmem>>, %arg4: memref<128x128xf32, #tpu.memory_space<vmem>>, %arg5: memref<16x128xf32, #tpu.memory_space<vmem>>, %arg6: memref<16x128xf32, #tpu.memory_space<vmem>>) attributes {dimension_semantics = [#tpu.dimension_semantics<parallel>, #tpu.dimension_semantics<parallel>, #tpu.dimension_semantics<arbitrary>], iteration_bounds = array<i64: 1, 1, 1>, scalar_prefetch = 0 : i64, scratch_operands = 1 : i64, tpu.core_type = #tpu.core_type<tc>, window_params = [{transform_indices = @transform_0, window_bounds = array<i64: 16, 128>}, {transform_indices = @transform_1, window_bounds = array<i64: 128, 128>}, {transform_indices = @transform_2, window_bounds = array<i64: 16, 128>}]} {
    %c0_i32 = arith.constant 0 : i32
    %0 = arith.cmpi eq, %arg2, %c0_i32 : i32
    %1 = arith.extui %0 : i1 to i32
    %c0_i32_0 = arith.constant 0 : i32
    %2 = arith.cmpi ne, %1, %c0_i32_0 : i32
    scf.if %2 {
      %cst_10 = arith.constant 0.000000e+00 : f32
      %12 = vector.broadcast %cst_10 : f32 to vector<16x128xf32>
      %c0_11 = arith.constant 0 : index
      %c0_12 = arith.constant 0 : index
      %13 = vector.load %arg6[%c0_11, %c0_12] : memref<16x128xf32, #tpu.memory_space<vmem>>, vector<16x128xf32>
      tpu.vector_store %arg6[%c0_11, %c0_12], %12 {strides = array<i32>} : memref<16x128xf32, #tpu.memory_space<vmem>>, vector<16x128xf32>,
    } else {
    }
    %c0 = arith.constant 0 : index
    %c0_1 = arith.constant 0 : index
    %3 = vector.load %arg6[%c0, %c0_1] : memref<16x128xf32, #tpu.memory_space<vmem>>, vector<16x128xf32>
    %c0_2 = arith.constant 0 : index
    %c0_3 = arith.constant 0 : index
    %4 = vector.load %arg3[%c0_2, %c0_3] : memref<16x128xf32, #tpu.memory_space<vmem>>, vector<16x128xf32>
    %c0_4 = arith.constant 0 : index
    %c0_5 = arith.constant 0 : index
    %5 = vector.load %arg4[%c0_4, %c0_5] : memref<128x128xf32, #tpu.memory_space<vmem>>, vector<128x128xf32>
    %cst = arith.constant dense<0.000000e+00> : vector<16x128xf32>
    %6 = tpu.matmul %4, %5, %cst {dimension_numbers = #tpu.dot_dimension_numbers<[1], [0], [0], [1], [0, 0, 1, 1], [], []>} : vector<16x128xf32>, vector<128x128xf32>, vector<16x128xf32> -> vector<16x128xf32>
    %7 = arith.addf %3, %6 : vector<16x128xf32>
    %c0_6 = arith.constant 0 : index
    %c0_7 = arith.constant 0 : index
    %8 = vector.load %arg6[%c0_6, %c0_7] : memref<16x128xf32, #tpu.memory_space<vmem>>, vector<16x128xf32>
    tpu.vector_store %arg6[%c0_6, %c0_7], %7 {strides = array<i32>} : memref<16x128xf32, #tpu.memory_space<vmem>>, vector<16x128xf32>,
    %c0_i32_8 = arith.constant 0 : i32
    %9 = arith.cmpi eq, %arg2, %c0_i32_8 : i32
    %10 = arith.extui %9 : i1 to i32
    %c0_i32_9 = arith.constant 0 : i32
    %11 = arith.cmpi ne, %10, %c0_i32_9 : i32
    scf.if %11 {
      %c0_10 = arith.constant 0 : index
      %c0_11 = arith.constant 0 : index
      %12 = vector.load %arg6[%c0_10, %c0_11] : memref<16x128xf32, #tpu.memory_space<vmem>>, vector<16x128xf32>
      %c0_12 = arith.constant 0 : index
      %c0_13 = arith.constant 0 : index
      %13 = vector.load %arg5[%c0_12, %c0_13] : memref<16x128xf32, #tpu.memory_space<vmem>>, vector<16x128xf32>
      tpu.vector_store %arg5[%c0_12, %c0_13], %12 {strides = array<i32>} : memref<16x128xf32, #tpu.memory_space<vmem>>, vector<16x128xf32>,
    } else {
    }
    return
  }
  func.func @transform_0(%arg0: i32, %arg1: i32, %arg2: i32) -> (i32, i32) {
    %c0_i32 = arith.constant 0 : i32
    return %arg0, %arg2 : i32, i32
  }
  func.func @transform_1(%arg0: i32, %arg1: i32, %arg2: i32) -> (i32, i32) {
    %c0_i32 = arith.constant 0 : i32
    return %arg2, %arg1 : i32, i32
  }
  func.func @transform_2(%arg0: i32, %arg1: i32, %arg2: i32) -> (i32, i32) {
    %c0_i32 = arith.constant 0 : i32
    return %arg0, %arg1 : i32, i32
  }
}

</mosaic_0001>

<llo_original>
// kernel: tpu_custom_call.1
$region0: #{tpu_custom_call.1}
  #allocation0 [shape = 'u32[]', space=smem, size = 0x4, offset = 0x4, fixed_abs, tag = 'smem constant byte address 0x4 - core index']
  #allocation1 [shape = 'u32[144,128]{1,0:T(1,128)}', space=vmem, size = 0x12000, scoped, tag = 'internal scratch']
  #allocation2 [shape = 'f32[16,128]{1,0:T(8,128)}', space=vmem, size = 0x2000, scoped, tag = 'scratch operand']
  %s0 = inlined_call_operand.hbm [shape: f32[16,128], index: 0, kind: input, shape index: {}]
  %s1 = inlined_call_operand.hbm [shape: f32[128,128], index: 1, kind: input, shape index: {}]
  %s2 = inlined_call_operand.hbm [shape: f32[16,128], index: 2, kind: output, shape index: {}]
  %s3 = sld [smem:[#allocation0]]
  $region34: #{tpu_custom_call.1} parent=0
    _
  %s5 = ssub.s32 1, %s3
  %s6 = scalar_select 0, %s5, %s3
  $region1: #{tpu_custom_call.1} parent=0
    #allocation3 [shape = 'u8[8192]{0}', space=vmem, size = 0x2000, scoped, tag = 'input window, operand 0, single buffered']
    #allocation4 [shape = 's32[1]{0}', space=sflag, size = 0x4, scoped, tag = 'scoped memory for tpu_custom_call.1']
    #allocation5 [shape = 's32[1]{0}', space=sflag, size = 0x4, scoped, tag = 'scoped memory for tpu_custom_call.1']
    #allocation6 [shape = 'u8[65536]{0}', space=vmem, size = 0x10000, scoped, tag = 'input window, operand 1, single buffered']
    #allocation7 [shape = 's32[1]{0}', space=sflag, size = 0x4, scoped, tag = 'scoped memory for tpu_custom_call.1']
    #allocation8 [shape = 'u8[8192]{0}', space=vmem, size = 0x2000, scoped, tag = 'output window, operand 0, single buffered']
    %7 = vsyncpa [#allocation4], 0
    %8 = vsyncpa [#allocation7], 0
    %9 = vsyncpa [#allocation5], 0
    // Predicated region
    $region2: #{tpu_custom_call.1} parent=1 // pred_check
      _
    $region3: #{tpu_custom_call.1} parent=1 // pred_check_branch
      %11 = sbr.rel (0) target = $region5
    $region4: #{tpu_custom_call.1} parent=1 // pred_region
      %s13 = ssub.s32 256, 256
      %14 = vsyncadd [#allocation4], %s13
      %s15 = sshll.u32 [#allocation3], 4
      %s16 = int_to_ptr.vmem [resolvable:$true] %s15
      %21 = dma.hbm_to_vmem [thread:$0]  %s0, 256, %s16, [#allocation4], 128, 128, 8
    $region5: #{tpu_custom_call.1} parent=1 // pred_fallthru
      _
    // Predicated region
    $region6: #{tpu_custom_call.1} parent=1 // pred_check
      _
    $region7: #{tpu_custom_call.1} parent=1 // pred_check_branch
      %23 = sbr.rel (0) target = $region9
    $region8: #{tpu_custom_call.1} parent=1 // pred_region
      %s25 = ssub.s32 2048, 2048
      %26 = vsyncadd [#allocation7], %s25
      %s27 = sshll.u32 [#allocation6], 4
      %s28 = int_to_ptr.vmem [resolvable:$true] %s27
      %33 = dma.hbm_to_vmem [thread:$0]  %s1, 2048, %s28, [#allocation7], 128, 128, 8
    $region9: #{tpu_custom_call.1} parent=1 // pred_fallthru
      _
    // Predicated region
    $region10: #{tpu_custom_call.1} parent=1 // pred_check
      _
    $region11: #{tpu_custom_call.1} parent=1 // pred_check_branch
      %35 = sbr.rel (0) target = $region13
    $region12: #{tpu_custom_call.1} parent=1 // pred_region
      %36 = dma.done [#allocation4], 256
    $region13: #{tpu_custom_call.1} parent=1 // pred_fallthru
      _
    // Predicated region
    $region14: #{tpu_custom_call.1} parent=1 // pred_check
      _
    $region15: #{tpu_custom_call.1} parent=1 // pred_check_branch
      %38 = sbr.rel (0) target = $region17
    $region16: #{tpu_custom_call.1} parent=1 // pred_region
      %39 = dma.done [#allocation7], 2048
    $region17: #{tpu_custom_call.1} parent=1 // pred_fallthru
      _
    %p40 = scmp.eq.s32.totalorder 0, 0
    // Predicated region
    $region18: #{tpu_custom_call.1} parent=1 // pred_check
      %p41 = pneg %p40
    $region19: #{tpu_custom_call.1} parent=1 // pred_check_branch
      %43 = sbr.rel (%p41) target = $region21
    $region20: #{tpu_custom_call.1} parent=1 // pred_region
      %44 = vst [vmem:[#allocation2] sm:$0xff] 0.0
      %45 = vst [vmem:[#allocation2 + $0x8] sm:$0xff] 0.0
    $region21: #{tpu_custom_call.1} parent=1 // pred_fallthru
      _
    %v46 = vld [vmem:[#allocation2] sm:$0xff]
    %v47 = vld [vmem:[#allocation2 + $0x8] sm:$0xff]
    %v48 = vld [vmem:[#allocation3] sm:$0xff]
    %v49 = vld [vmem:[#allocation3 + $0x8] sm:$0xff]
    %v50 = vld [vmem:[#allocation6] sm:$0xff]
    %v51 = vld [vmem:[#allocation6 + $0x8] sm:$0xff]
    %v52 = vld [vmem:[#allocation6 + $0x10] sm:$0xff]
    %v53 = vld [vmem:[#allocation6 + $0x18] sm:$0xff]
    %v54 = vld [vmem:[#allocation6 + $0x20] sm:$0xff]
    %v55 = vld [vmem:[#allocation6 + $0x28] sm:$0xff]
    %v56 = vld [vmem:[#allocation6 + $0x30] sm:$0xff]
    %v57 = vld [vmem:[#allocation6 + $0x38] sm:$0xff]
    %v58 = vld [vmem:[#allocation6 + $0x40] sm:$0xff]
    %v59 = vld [vmem:[#allocation6 + $0x48] sm:$0xff]
    %v60 = vld [vmem:[#allocation6 + $0x50] sm:$0xff]
    %v61 = vld [vmem:[#allocation6 + $0x58] sm:$0xff]
    %v62 = vld [vmem:[#allocation6 + $0x60] sm:$0xff]
    %v63 = vld [vmem:[#allocation6 + $0x68] sm:$0xff]
    %v64 = vld [vmem:[#allocation6 + $0x70] sm:$0xff]
    %v65 = vld [vmem:[#allocation6 + $0x78] sm:$0xff]
    %66 = vmatprep.subr.mxu0 0.0
    %67 = vmatpush1.msra.mxu0 %v50
    %68 = vmatprep.subr.mxu0 0.0
    %69 = vmatpush1.msra.mxu0 %v51
    %70 = vmatprep.subr.mxu0 0.0
    %71 = vmatpush1.msra.mxu0 %v52
    %72 = vmatprep.subr.mxu0 0.0
    %73 = vmatpush1.msra.mxu0 %v53
    %74 = vmatprep.subr.mxu0 0.0
    %75 = vmatpush1.msra.mxu0 %v54
    %76 = vmatprep.subr.mxu0 0.0
    %77 = vmatpush1.msra.mxu0 %v55
    %78 = vmatprep.subr.mxu0 0.0
    %79 = vmatpush1.msra.mxu0 %v56
    %80 = vmatprep.subr.mxu0 0.0
    %81 = vmatpush1.msra.mxu0 %v57
    %82 = vmatprep.subr.mxu0 0.0
    %83 = vmatpush1.msra.mxu0 %v58
    %84 = vmatprep.subr.mxu0 0.0
    %85 = vmatpush1.msra.mxu0 %v59
    %86 = vmatprep.subr.mxu0 0.0
    %87 = vmatpush1.msra.mxu0 %v60
    %88 = vmatprep.subr.mxu0 0.0
    %89 = vmatpush1.msra.mxu0 %v61
    %90 = vmatprep.subr.mxu0 0.0
    %91 = vmatpush1.msra.mxu0 %v62
    %92 = vmatprep.subr.mxu0 0.0
    %93 = vmatpush1.msra.mxu0 %v63
    %94 = vmatprep.subr.mxu0 0.0
    %95 = vmatpush1.msra.mxu0 %v64
    %96 = vmatprep.subr.mxu0 0.0
    %97 = vmatpush1.msra.mxu0 %v65
    %98 = vmatprep.subr.mxu0 0.0
    %99 = vmatpush1.msra.mxu0 0.0
    %100 = vmatprep.subr.mxu0 0.0
    %101 = vmatpush1.msra.mxu0 0.0
    %102 = vmatprep.subr.mxu0 0.0
    %103 = vmatpush1.msra.mxu0 0.0
    %104 = vmatprep.subr.mxu0 0.0
    %105 = vmatpush1.msra.mxu0 0.0
    %106 = vmatprep.subr.mxu0 0.0
    %107 = vmatpush1.msra.mxu0 0.0
    %108 = vmatprep.subr.mxu0 0.0
    %109 = vmatpush1.msra.mxu0 0.0
    %110 = vmatprep.subr.mxu0 0.0
    %111 = vmatpush1.msra.mxu0 0.0
    %112 = vmatprep.subr.mxu0 0.0
    %113 = vmatpush1.msra.mxu0 0.0
    %114 = vmatprep.subr.mxu0 0.0
    %115 = vmatpush1.msra.mxu0 0.0
    %116 = vmatprep.subr.mxu0 0.0
    %117 = vmatpush1.msra.mxu0 0.0
    %118 = vmatprep.subr.mxu0 0.0
    %119 = vmatpush1.msra.mxu0 0.0
    %120 = vmatprep.subr.mxu0 0.0
    %121 = vmatpush1.msra.mxu0 0.0
    %122 = vmatprep.subr.mxu0 0.0
    %123 = vmatpush1.msra.mxu0 0.0
    %124 = vmatprep.subr.mxu0 0.0
    %125 = vmatpush1.msra.mxu0 0.0
    %126 = vmatprep.subr.mxu0 0.0
    %127 = vmatpush1.msra.mxu0 0.0
    %128 = vmatprep.subr.mxu0 0.0
    %129 = vmatpush1.msra.mxu0 0.0
    %130 = vmatprep.mubr.f32.mxu0 0.0
    %131 = vmatmul.mubr.f32.gmra.mrb[0].mxu0 %v48
    %v132 = vpop.f32.mrb[0].mxu0
    %v133 = vadd.f32 0.0, %v132
    %v134 = vpop.f32.mrb[0].mxu0
    %135 = vmatprep.mubr.f32.mxu0 0.0
    %136 = vmatmul.mubr.f32.gmra.mrb[0].mxu0 %v49
    %v137 = vpop.f32.mrb[0].mxu0
    %v138 = vadd.f32 0.0, %v137
    %v139 = vpop.f32.mrb[0].mxu0
    %140 = vdwg.mxu0
    %v141 = vadd.f32 %v46, %v133
    %v142 = vadd.f32 %v47, %v138
    %143 = vst [vmem:[#allocation2] sm:$0xff] %v141
    %144 = vst [vmem:[#allocation2 + $0x8] sm:$0xff] %v142
    // Predicated region
    $region22: #{tpu_custom_call.1} parent=1 // pred_check
      %p145 = pneg %p40
    $region23: #{tpu_custom_call.1} parent=1 // pred_check_branch
      %147 = sbr.rel (%p145) target = $region25
    $region24: #{tpu_custom_call.1} parent=1 // pred_region
      %v148 = vld [vmem:[#allocation2] sm:$0xff]
      %v149 = vld [vmem:[#allocation2 + $0x8] sm:$0xff]
      %150 = vst [vmem:[#allocation8] sm:$0xff] %v148
      %151 = vst [vmem:[#allocation8 + $0x8] sm:$0xff] %v149
    $region25: #{tpu_custom_call.1} parent=1 // pred_fallthru
      _
    // Predicated region
    $region26: #{tpu_custom_call.1} parent=1 // pred_check
      _
    $region27: #{tpu_custom_call.1} parent=1 // pred_check_branch
      %153 = sbr.rel (0) target = $region29
    $region28: #{tpu_custom_call.1} parent=1 // pred_region
      %s155 = ssub.s32 256, 256
      %156 = vsyncadd [#allocation5], %s155
      %s157 = sshll.u32 [#allocation8], 4
      %s158 = int_to_ptr.vmem [resolvable:$true] %s157
      %163 = dma.vmem_to_hbm [thread:$0]  %s158, 256, %s2, [#allocation5], 128, 128, 8
    $region29: #{tpu_custom_call.1} parent=1 // pred_fallthru
      _
    // Predicated region
    $region30: #{tpu_custom_call.1} parent=1 // pred_check
      _
    $region31: #{tpu_custom_call.1} parent=1 // pred_check_branch
      %165 = sbr.rel (0) target = $region33
    $region32: #{tpu_custom_call.1} parent=1 // pred_region
      %166 = dma.done [#allocation5], 256
    $region33: #{tpu_custom_call.1} parent=1 // pred_fallthru
      _
    %167 = vsyncpa [#allocation4], 1
    %168 = vsyncpa [#allocation7], 1
    %169 = vsyncpa [#allocation5], 1

</llo_original>
